<compile_context>
chip_gen: v7x
topology: tpu7x:2x2x1
jax: 0.10.0
libtpu: 0.0.40
codegen_flags: <defaults>
</compile_context>

<pallas_src>
import jax
import jax.numpy as jnp
from jax.experimental import pallas as pl
from jax.experimental.pallas import tpu as pltpu


def _implicit_m_kernel(scale_ref, x_ref, o_ref):
    # scale_ref: (row_tile, 1) f32; x_ref / o_ref: (row_tile, col_tile) x.dtype.
    # Multiply in f32 (PyTorch promotes to the parameter dtype), cast at store.
    x = x_ref[...].astype(jnp.float32)
    s = scale_ref[...].astype(jnp.float32)
    o_ref[...] = (x * s).astype(o_ref.dtype)


def _hw_config():
    """Per-generation (bytes per block buffer, vmem_limit_bytes, min row steps)."""
    try:
        kind = jax.devices()[0].device_kind.lower()
    except Exception:
        kind = ""
    if "v7" in kind or "7x" in kind:
        # v7x: ~2.4x v6e HBM BW but only 64 MiB physical VMEM and 2 TCs/chip.
        # Bigger blocks + explicit (safe) scoped-VMEM cap + >=4 row grid steps.
        return 6 << 20, 48 << 20, 4
    if "v6" in kind:
        # v6e: 32 MiB default scoped VMEM; ~4 MiB blocks amortize step overhead.
        return 4 << 20, None, 2
    # v5e / v5p / v4 / unknown: stay comfortably inside the 16 MiB default.
    return 2 << 20, None, 2


def _choose_tiles(rows, cols, itemsize, block_bytes, min_row_steps):
    # Byte-based per-buffer budget -> element budget for this dtype.
    block_elems = max(block_bytes // itemsize, 8 * 128)

    rows_per_block = block_elems // max(cols, 1)
    if rows_per_block >= 8:
        # Preferred path: full-extent columns (dense, contiguous HBM DMA per
        # block, unmasked lane stores), tile along rows only.
        col_tile = cols
        row_budget = (rows_per_block // 8) * 8
    else:
        # Pathologically wide last dim: lane-aligned column tiles, 8-row blocks.
        col_tile = max(128, (block_elems // 8) // 128 * 128)
        if col_tile >= cols:
            col_tile = cols
        row_budget = 8

    row_tile = rows if rows <= row_budget else row_budget

    # Keep enough row blocks for megacore sharding / DMA-compute pipelining on
    # non-trivially-sized inputs (v7x's 2 TCs only split work on parallel axes).
    if rows * cols * itemsize > (4 << 20) and min_row_steps > 1:
        cap = (rows // min_row_steps) // 8 * 8
        if 8 <= cap < row_tile:
            row_tile = cap

    return row_tile, col_tile


def implicit_m(x, implicit, *, block_bytes=None, donate_x=False):
    """y = implicit * x with implicit of shape (1, C, 1, 1), x NCHW."""
    N, C, H, W = x.shape
    assert implicit.shape == (1, C, 1, 1)
    rows, cols = N * C, H * W

    default_bytes, vmem_limit, min_row_steps = _hw_config()
    if block_bytes is None:
        block_bytes = default_bytes

    # Lane-dense 2-D view of x; per-row f32 scale column (parameter stays f32
    # so the in-kernel multiply matches PyTorch's promoted-dtype numerics).
    x2d = x.reshape(rows, cols)
    scale = jnp.broadcast_to(
        implicit.reshape(1, C, 1).astype(jnp.float32), (N, C, 1)
    ).reshape(rows, 1)

    itemsize = jnp.dtype(x.dtype).itemsize
    row_tile, col_tile = _choose_tiles(rows, cols, itemsize, block_bytes,
                                       min_row_steps)
    grid = (pl.cdiv(rows, row_tile), pl.cdiv(cols, col_tile))

    cost = pl.CostEstimate(
        flops=rows * cols,
        transcendentals=0,
        bytes_accessed=2 * rows * cols * itemsize + rows * 4,
    )

    cp_kwargs = dict(dimension_semantics=("parallel", "parallel"))
    if vmem_limit is not None:
        cp_kwargs["vmem_limit_bytes"] = vmem_limit

    y2d = pl.pallas_call(
        _implicit_m_kernel,
        out_shape=jax.ShapeDtypeStruct((rows, cols), x.dtype),
        grid_spec=pl.GridSpec(
            grid=grid,
            in_specs=[
                pl.BlockSpec((row_tile, 1), lambda i, j: (i, 0)),
                pl.BlockSpec((row_tile, col_tile), lambda i, j: (i, j)),
            ],
            out_specs=pl.BlockSpec((row_tile, col_tile), lambda i, j: (i, j)),
        ),
        compiler_params=pltpu.CompilerParams(**cp_kwargs),
        cost_estimate=cost,
        input_output_aliases={1: 0} if donate_x else {},
    )(scale, x2d)

    return y2d.reshape(N, C, H, W)


def init_implicit_m_params(key, channel, mean=0.0, std=0.02, dtype=jnp.float32):
    # nn.Parameter(torch.ones(1, C, 1, 1)); nn.init.normal_(param, mean, std)
    # normal_ overwrites the ones, so the parameter is just N(mean, std).
    return mean + std * jax.random.normal(key, (1, channel, 1, 1), dtype=dtype)


if __name__ == "__main__":
    key = jax.random.PRNGKey(0)
    k_x, k_p, k_x2 = jax.random.split(key, 3)

    # (1) Small f32 NCHW, single full block.
    N, C, H, W = 2, 4, 16, 16
    x = jax.random.normal(k_x, (N, C, H, W), dtype=jnp.float32)
    implicit = init_implicit_m_params(k_p, C)
    y = jax.block_until_ready(implicit_m(x, implicit))
    y_ref = implicit * x
    assert y.shape == x.shape and y.dtype == x.dtype
    assert jnp.allclose(y, y_ref, atol=1e-6, rtol=1e-6)

    # (2) bf16 with non-multiple-of-128 spatial extent: full-column path,
    # f32 math in-kernel, bf16 store.
    N2, C2, H2, W2 = 2, 8, 56, 56
    x2 = jax.random.normal(k_x2, (N2, C2, H2, W2), dtype=jnp.bfloat16)
    imp2 = init_implicit_m_params(k_p, C2)
    y2 = jax.block_until_ready(implicit_m(x2, imp2))
    y2_ref = (imp2 * x2.astype(jnp.float32)).astype(jnp.bfloat16)
    assert y2.shape == x2.shape and y2.dtype == x2.dtype
    assert jnp.allclose(y2.astype(jnp.float32), y2_ref.astype(jnp.float32),
                        atol=1e-2, rtol=1e-2)

    # (3) Force multiple row blocks (full-column path, >1 grid step).
    y3 = jax.block_until_ready(implicit_m(x2, imp2, block_bytes=3136 * 8 * 2))
    assert jnp.allclose(y3.astype(jnp.float32), y2_ref.astype(jnp.float32),
                        atol=1e-2, rtol=1e-2)

    # (4) Force the lane-tiled column fallback (masked trailing column block).
    y4 = jax.block_until_ready(implicit_m(x2, imp2, block_bytes=8 * 1024 * 2))
    assert jnp.allclose(y4.astype(jnp.float32), y2_ref.astype(jnp.float32),
                        atol=1e-2, rtol=1e-2)

    print("KERNEL_OK")
</pallas_src>

<mosaic_0001>
module attributes {stable_mosaic.version = 11 : i64} {
  func.func @_implicit_m_kernel(%arg0: i32, %arg1: i32, %arg2: memref<8x1xf32, #tpu.memory_space<vmem>>, %arg3: memref<8x256xf32, #tpu.memory_space<vmem>>, %arg4: memref<8x256xf32, #tpu.memory_space<vmem>>) attributes {dimension_semantics = [#tpu.dimension_semantics<parallel>, #tpu.dimension_semantics<parallel>], iteration_bounds = array<i64: 1, 1>, scalar_prefetch = 0 : i64, scratch_operands = 0 : i64, tpu.core_type = #tpu.core_type<tc>, window_params = [{transform_indices = @transform_0, window_bounds = array<i64: 8, 1>}, {transform_indices = @transform_1, window_bounds = array<i64: 8, 256>}, {transform_indices = @transform_2, window_bounds = array<i64: 8, 256>}]} {
    %c0 = arith.constant 0 : index
    %c0_0 = arith.constant 0 : index
    %0 = vector.load %arg3[%c0, %c0_0] : memref<8x256xf32, #tpu.memory_space<vmem>>, vector<8x256xf32>
    %c0_1 = arith.constant 0 : index
    %c0_2 = arith.constant 0 : index
    %1 = vector.load %arg2[%c0_1, %c0_2] : memref<8x1xf32, #tpu.memory_space<vmem>>, vector<8x1xf32>
    %2 = vector.broadcast %1 : vector<8x1xf32> to vector<8x256xf32>
    %3 = arith.mulf %0, %2 : vector<8x256xf32>
    %c0_3 = arith.constant 0 : index
    %c0_4 = arith.constant 0 : index
    %4 = vector.load %arg4[%c0_3, %c0_4] : memref<8x256xf32, #tpu.memory_space<vmem>>, vector<8x256xf32>
    tpu.vector_store %arg4[%c0_3, %c0_4], %3 {strides = array<i32>} : memref<8x256xf32, #tpu.memory_space<vmem>>, vector<8x256xf32>,
    return
  }
  func.func @transform_0(%arg0: i32, %arg1: i32) -> (i32, i32) {
    %c0_i32 = arith.constant 0 : i32
    %c0_i32_0 = arith.constant 0 : i32
    return %arg0, %c0_i32 : i32, i32
  }
  func.func @transform_1(%arg0: i32, %arg1: i32) -> (i32, i32) {
    %c0_i32 = arith.constant 0 : i32
    return %arg0, %arg1 : i32, i32
  }
  func.func @transform_2(%arg0: i32, %arg1: i32) -> (i32, i32) {
    %c0_i32 = arith.constant 0 : i32
    return %arg0, %arg1 : i32, i32
  }
}

</mosaic_0001>

<llo_original>
// kernel: tpu_custom_call.1
$region0: #{tpu_custom_call.1}
  #allocation0 [shape = 'u32[]', space=smem, size = 0x4, offset = 0x4, fixed_abs, tag = 'smem constant byte address 0x4 - core index']
  #allocation1 [shape = 'u32[144,128]{1,0:T(1,128)}', space=vmem, size = 0x12000, scoped, tag = 'internal scratch']
  %s0 = inlined_call_operand.vmem [shape: f32[8,1], index: 0, kind: input, shape index: {}]
  %s1 = inlined_call_operand.hbm [shape: f32[8,256], index: 1, kind: input, shape index: {}]
  %s2 = inlined_call_operand.hbm [shape: f32[8,256], index: 2, kind: output, shape index: {}]
  %s3 = sld [smem:[#allocation0]]
  $region22: #{tpu_custom_call.1} parent=0
    _
  %s5 = ssub.s32 1, %s3
  %s6 = scalar_select 0, %s5, %s3
  $region1: #{tpu_custom_call.1} parent=0
    #allocation2 [shape = 'u8[8192]{0}', space=vmem, size = 0x2000, scoped, tag = 'input window, operand 1, single buffered']
    #allocation3 [shape = 's32[1]{0}', space=sflag, size = 0x4, scoped, tag = 'scoped memory for tpu_custom_call.1']
    #allocation4 [shape = 's32[1]{0}', space=sflag, size = 0x4, scoped, tag = 'scoped memory for tpu_custom_call.1']
    #allocation5 [shape = 'u8[8192]{0}', space=vmem, size = 0x2000, scoped, tag = 'output window, operand 0, single buffered']
    %7 = vsyncpa [#allocation3], 0
    %8 = vsyncpa [#allocation4], 0
    // Predicated region
    $region2: #{tpu_custom_call.1} parent=1 // pred_check
      _
    $region3: #{tpu_custom_call.1} parent=1 // pred_check_branch
      %10 = sbr.rel (0) target = $region5
    $region4: #{tpu_custom_call.1} parent=1 // pred_region
      _
    $region5: #{tpu_custom_call.1} parent=1 // pred_fallthru
      _
    // Predicated region
    $region6: #{tpu_custom_call.1} parent=1 // pred_check
      _
    $region7: #{tpu_custom_call.1} parent=1 // pred_check_branch
      %12 = sbr.rel (0) target = $region9
    $region8: #{tpu_custom_call.1} parent=1 // pred_region
      %s14 = ssub.s32 256, 256
      %15 = vsyncadd [#allocation3], %s14
      %s17 = sshll.u32 [#allocation2], 4
      %s18 = int_to_ptr.vmem [resolvable:$true] %s17
      %20 = dma.hbm_to_vmem [thread:$0]  %s1, 256, %s18, [#allocation3]
    $region9: #{tpu_custom_call.1} parent=1 // pred_fallthru
      _
    // Predicated region
    $region10: #{tpu_custom_call.1} parent=1 // pred_check
      _
    $region11: #{tpu_custom_call.1} parent=1 // pred_check_branch
      %22 = sbr.rel (0) target = $region13
    $region12: #{tpu_custom_call.1} parent=1 // pred_region
      %23 = dma.done [#allocation3], 256
    $region13: #{tpu_custom_call.1} parent=1 // pred_fallthru
      _
    %v24 = vld [vmem:[#allocation2] sm:$0xff]
    %v25 = vld [vmem:[#allocation2 + $0x8] sm:$0xff]
    %v26 = vld [vmem:[%s0] sm:$0xff]
    %28 = vset.pattern.permute.xlu0 0
    %29 = vperm.xlu0 %28, %v26
    %v30 = vpop.permute.xlu0 %29
    %v32 = vmul.f32 %v24, %v30
    %v33 = vmul.f32 %v25, %v30
    %34 = vst [vmem:[#allocation5] sm:$0xff] %v32
    %35 = vst [vmem:[#allocation5 + $0x8] sm:$0xff] %v33
    // Predicated region
    $region14: #{tpu_custom_call.1} parent=1 // pred_check
      _
    $region15: #{tpu_custom_call.1} parent=1 // pred_check_branch
      %37 = sbr.rel (0) target = $region17
    $region16: #{tpu_custom_call.1} parent=1 // pred_region
      %s39 = ssub.s32 256, 256
      %40 = vsyncadd [#allocation4], %s39
      %s42 = sshll.u32 [#allocation5], 4
      %s43 = int_to_ptr.vmem [resolvable:$true] %s42
      %45 = dma.vmem_to_hbm [thread:$0]  %s43, 256, %s2, [#allocation4]
    $region17: #{tpu_custom_call.1} parent=1 // pred_fallthru
      _
    // Predicated region
    $region18: #{tpu_custom_call.1} parent=1 // pred_check
      _
    $region19: #{tpu_custom_call.1} parent=1 // pred_check_branch
      %47 = sbr.rel (0) target = $region21
    $region20: #{tpu_custom_call.1} parent=1 // pred_region
      %48 = dma.done [#allocation4], 256
    $region21: #{tpu_custom_call.1} parent=1 // pred_fallthru
      _
    %49 = vsyncpa [#allocation3], 1
    %50 = vsyncpa [#allocation4], 1

</llo_original>
